<compile_context>
chip_gen: v7x
topology: tpu7x:2x2x1
jax: 0.10.0
libtpu: 0.0.40
codegen_flags: <defaults>
</compile_context>

<pallas_src>
import numpy as np
import jax
import jax.numpy as jnp
from jax.experimental import pallas as pl
from jax.experimental.pallas import tpu as pltpu


def _round_up(x, m):
    return ((x + m - 1) // m) * m


def _multiply_kernel(xi_ref, xj_ref, e_ref, v_ref, w1_ref, w2_ref, w3_ref, out_ref):
    # xi/xj/e/v refs: (tile, d)   w{1,2,3}_ref: (d, d) = W[:, slice].T   out_ref: (1, tile)
    # lin(k) with k = [x_j | e_ij | v]  ==  x_j @ W1.T + e_ij @ W2.T + v @ W3.T
    # Three small MXU matmuls with f32 accumulation; no in-VMEM concat needed.
    t = jnp.dot(xj_ref[...], w1_ref[...], preferred_element_type=jnp.float32)
    t += jnp.dot(e_ref[...], w2_ref[...], preferred_element_type=jnp.float32)
    t += jnp.dot(v_ref[...], w3_ref[...], preferred_element_type=jnp.float32)
    # (lin(k) * x_i).sum(dim=1), then tanh -> lane-dense (1, tile) store.
    row = jnp.tanh(jnp.sum(t * xi_ref[...].astype(jnp.float32), axis=-1))
    out_ref[...] = row[None, :].astype(out_ref.dtype)


def multiply_forward(x_i, x_j, e_ij, v, weight, *, tile_n=None,
                     stream_dtype=None, vmem_limit_bytes=None):
    """Pallas forward for `Multiply` (agg_k = concat along the feature axis).

    x_i, x_j, e_ij, v : [N, in_size]
    weight            : [in_size, in_size * 3]   (PyTorch Linear.weight: [out, in])
    returns           : [N, 1] in x_i.dtype
    """
    n, d = x_i.shape
    d_out, dk = weight.shape
    assert d_out == d and dk == 3 * d, "weight must be [in_size, in_size * 3]"
    out_dtype = x_i.dtype

    # Dtype policy: stream inputs in their existing HBM dtype.  Casting here
    # (e.g. f32 -> bf16) is an extra full HBM read+write pass that is net
    # slower; only cast when the caller explicitly asks for it.
    sd = x_i.dtype if stream_dtype is None else np.dtype(stream_dtype)
    if sd != x_i.dtype:
        x_i, x_j, e_ij, v = (a.astype(sd) for a in (x_i, x_j, e_ij, v))

    # Pre-split / pre-transpose the (tiny, VMEM-resident) weight:
    #   lin(k) = x_j @ W[:, :d].T + e_ij @ W[:, d:2d].T + v @ W[:, 2d:].T
    w = weight.astype(sd)
    wt1 = w[:, 0 * d:1 * d].T
    wt2 = w[:, 1 * d:2 * d].T
    wt3 = w[:, 2 * d:3 * d].T

    # Tile choice (rows per grid step):
    #  * auto: ~4 MiB of streamed input per step across the 4 row arrays
    #    (8K-16K rows at d=32) so the ~0.35us per-step overhead is negligible;
    #  * bounded so large-N problems keep >= ~8 grid blocks (v7x's 2 TCs both
    #    need entries on the 'parallel' axis);
    #  * lane-aligned (multiple of 128) so the (1, tile) output stores are
    #    unmasked lane-dense vsts.
    # Working set at the auto tile: 4 inputs * tile * d * itemsize * 2 buffers
    # + f32 temps ~= 10-13 MiB -> fits v5e's 16 MiB scoped default and v7x's
    # 64 MiB physical VMEM.  For larger d the auto tile scales down to keep the
    # same byte budget; pass vmem_limit_bytes to override the scoped limit.
    itemsize = np.dtype(sd).itemsize
    if tile_n is None:
        rows = (4 << 20) // max(1, 4 * d * itemsize)
        rows = max(1024, min(rows, 16384))
        rows = min(rows, _round_up(pl.cdiv(n, 8), 128))   # keep >= ~8 blocks
    else:
        rows = max(1, int(tile_n))
    tile = max(128, (rows // 128) * 128)

    if n <= tile:
        # Single block equal to the full arrays: valid for any small n,
        # no padding anywhere.
        tile = n
        grid = (1,)
        n_pad = n
    else:
        grid = (pl.cdiv(n, tile),)
        # Only the (cheap, freshly allocated) output is padded to the block
        # boundary; the four input arrays stay unpadded in HBM and Pallas
        # handles the ragged last row-block itself (garbage rows beyond n are
        # discarded by the final slice).
        n_pad = grid[0] * tile

    cp = dict(dimension_semantics=("parallel",))   # megacore / v7x 2-TC sharding
    if vmem_limit_bytes is not None:
        cp["vmem_limit_bytes"] = int(vmem_limit_bytes)

    row_spec = pl.BlockSpec((tile, d), lambda i: (i, 0))
    w_spec = pl.BlockSpec((d, d), lambda i: (0, 0))     # resident across the grid
    # (If a profile shows exposed DMA at the large tile, sweep
    #  pipeline_mode=pl.Buffered(3) on row_spec -- VMEM headroom allows it.)

    out = pl.pallas_call(
        _multiply_kernel,
        out_shape=jax.ShapeDtypeStruct((1, n_pad), out_dtype),
        grid_spec=pltpu.PrefetchScalarGridSpec(
            num_scalar_prefetch=0,
            grid=grid,
            in_specs=[row_spec, row_spec, row_spec, row_spec,
                      w_spec, w_spec, w_spec],
            out_specs=pl.BlockSpec((1, tile), lambda i: (0, i)),
        ),
        compiler_params=pltpu.CompilerParams(**cp),
    )(x_i, x_j, e_ij, v, wt1, wt2, wt3)

    # lane-dense (1, n_pad) -> module's (N, 1)
    return out.reshape(n_pad, 1)[:n]


def _reference(x_i, x_j, e_ij, v, weight):
    # Same math / orientation as the PyTorch module:
    #   k = concat(x_j, e_ij, v); tanh(((k @ W.T) * x_i).sum(1, keepdim=True))
    k = jnp.concatenate([x_j, e_ij, v], axis=-1).astype(jnp.float32)
    t = jnp.dot(k, weight.astype(jnp.float32).T, preferred_element_type=jnp.float32)
    return jnp.tanh(jnp.sum(t * x_i.astype(jnp.float32), axis=-1, keepdims=True))


if __name__ == "__main__":
    N, in_size, k_s = 8, 32, 3

    key = jax.random.PRNGKey(0)
    k_xi, k_xj, k_e, k_v, k_w = jax.random.split(key, 5)
    x_i = jax.random.normal(k_xi, (N, in_size), dtype=jnp.float32)
    x_j = jax.random.normal(k_xj, (N, in_size), dtype=jnp.float32)
    e_ij = jax.random.normal(k_e, (N, in_size), dtype=jnp.float32)
    v = jax.random.normal(k_v, (N, in_size), dtype=jnp.float32)

    # PyTorch Linear(in_size * k_s, in_size, bias=False).weight layout:
    # [out_features, in_features] = [in_size, in_size * k_s].
    bound = 1.0 / jnp.sqrt(in_size * k_s)
    weight = jax.random.uniform(
        k_w, (in_size, in_size * k_s), dtype=jnp.float32, minval=-bound, maxval=bound
    )

    # 1) f32 inputs streamed as f32 (default: no wrapper-side cast), small
    #    single-block path.
    out_f32 = jax.block_until_ready(multiply_forward(x_i, x_j, e_ij, v, weight))
    ref_f32 = _reference(x_i, x_j, e_ij, v, weight)
    assert out_f32.shape == (N, 1)
    assert jnp.allclose(out_f32, ref_f32, atol=1e-4, rtol=1e-4), "f32 mismatch"

    # 2) Producer-already-bf16 path: inputs handed over as bf16, streamed as-is
    #    (reference on identically-cast inputs; loose tolerance covers bf16
    #    output quantization and accumulation-order differences).
    cast = lambda a: a.astype(jnp.bfloat16)
    out_bf16 = jax.block_until_ready(
        multiply_forward(cast(x_i), cast(x_j), cast(e_ij), cast(v), cast(weight)))
    ref_bf16 = _reference(cast(x_i), cast(x_j), cast(e_ij), cast(v), cast(weight))
    assert out_bf16.shape == (N, 1)
    assert jnp.allclose(out_bf16.astype(jnp.float32), ref_bf16,
                        atol=2e-2, rtol=2e-2), "bf16 mismatch"

    # 3) Multi-tile grid with ragged N: no input padding, output-only padding,
    #    unmasked lane-dense stores (grid = 4, last block ragged).
    N2 = 1000
    keys2 = jax.random.split(jax.random.PRNGKey(1), 4)
    big = [jax.random.normal(k, (N2, in_size), dtype=jnp.float32) for k in keys2]
    out_big = jax.block_until_ready(multiply_forward(*big, weight, tile_n=256))
    ref_big = _reference(*big, weight)
    assert out_big.shape == (N2, 1)
    assert jnp.allclose(out_big, ref_big, atol=1e-4, rtol=1e-4), "tiled mismatch"

    # 4) Auto tile-selection path (grid bounded to ~8 blocks for v7x).
    N3 = 5000
    keys3 = jax.random.split(jax.random.PRNGKey(2), 4)
    med = [jax.random.normal(k, (N3, in_size), dtype=jnp.float32) for k in keys3]
    out_med = jax.block_until_ready(multiply_forward(*med, weight))
    ref_med = _reference(*med, weight)
    assert out_med.shape == (N3, 1)
    assert jnp.allclose(out_med, ref_med, atol=1e-4, rtol=1e-4), "auto-tile mismatch"

    print("KERNEL_OK")
</pallas_src>

<mosaic_0001>
module attributes {stable_mosaic.version = 11 : i64} {
  func.func @_multiply_kernel(%arg0: i32, %arg1: memref<8x32xf32, #tpu.memory_space<vmem>>, %arg2: memref<8x32xf32, #tpu.memory_space<vmem>>, %arg3: memref<8x32xf32, #tpu.memory_space<vmem>>, %arg4: memref<8x32xf32, #tpu.memory_space<vmem>>, %arg5: memref<32x32xf32, #tpu.memory_space<vmem>>, %arg6: memref<32x32xf32, #tpu.memory_space<vmem>>, %arg7: memref<32x32xf32, #tpu.memory_space<vmem>>, %arg8: memref<1x8xf32, #tpu.memory_space<vmem>>) attributes {dimension_semantics = [#tpu.dimension_semantics<parallel>], iteration_bounds = array<i64: 1>, scalar_prefetch = 0 : i64, scratch_operands = 0 : i64, tpu.core_type = #tpu.core_type<tc>, window_params = [{transform_indices = @transform_0, window_bounds = array<i64: 8, 32>}, {transform_indices = @transform_1, window_bounds = array<i64: 8, 32>}, {transform_indices = @transform_2, window_bounds = array<i64: 8, 32>}, {transform_indices = @transform_3, window_bounds = array<i64: 8, 32>}, {pipeline_mode = #tpu.pipeline_mode<synchronous>, transform_indices = @transform_4, window_bounds = array<i64: 32, 32>}, {pipeline_mode = #tpu.pipeline_mode<synchronous>, transform_indices = @transform_5, window_bounds = array<i64: 32, 32>}, {pipeline_mode = #tpu.pipeline_mode<synchronous>, transform_indices = @transform_6, window_bounds = array<i64: 32, 32>}, {transform_indices = @transform_7, window_bounds = array<i64: 1, 8>}]} {
    %c0 = arith.constant 0 : index
    %c0_0 = arith.constant 0 : index
    %0 = vector.load %arg2[%c0, %c0_0] : memref<8x32xf32, #tpu.memory_space<vmem>>, vector<8x32xf32>
    %c0_1 = arith.constant 0 : index
    %c0_2 = arith.constant 0 : index
    %1 = vector.load %arg5[%c0_1, %c0_2] : memref<32x32xf32, #tpu.memory_space<vmem>>, vector<32x32xf32>
    %cst = arith.constant dense<0.000000e+00> : vector<8x32xf32>
    %2 = tpu.matmul %0, %1, %cst {dimension_numbers = #tpu.dot_dimension_numbers<[1], [0], [0], [1], [0, 0, 1, 1], [], []>} : vector<8x32xf32>, vector<32x32xf32>, vector<8x32xf32> -> vector<8x32xf32>
    %c0_3 = arith.constant 0 : index
    %c0_4 = arith.constant 0 : index
    %3 = vector.load %arg3[%c0_3, %c0_4] : memref<8x32xf32, #tpu.memory_space<vmem>>, vector<8x32xf32>
    %c0_5 = arith.constant 0 : index
    %c0_6 = arith.constant 0 : index
    %4 = vector.load %arg6[%c0_5, %c0_6] : memref<32x32xf32, #tpu.memory_space<vmem>>, vector<32x32xf32>
    %cst_7 = arith.constant dense<0.000000e+00> : vector<8x32xf32>
    %5 = tpu.matmul %3, %4, %cst_7 {dimension_numbers = #tpu.dot_dimension_numbers<[1], [0], [0], [1], [0, 0, 1, 1], [], []>} : vector<8x32xf32>, vector<32x32xf32>, vector<8x32xf32> -> vector<8x32xf32>
    %6 = arith.addf %2, %5 : vector<8x32xf32>
    %c0_8 = arith.constant 0 : index
    %c0_9 = arith.constant 0 : index
    %7 = vector.load %arg4[%c0_8, %c0_9] : memref<8x32xf32, #tpu.memory_space<vmem>>, vector<8x32xf32>
    %c0_10 = arith.constant 0 : index
    %c0_11 = arith.constant 0 : index
    %8 = vector.load %arg7[%c0_10, %c0_11] : memref<32x32xf32, #tpu.memory_space<vmem>>, vector<32x32xf32>
    %cst_12 = arith.constant dense<0.000000e+00> : vector<8x32xf32>
    %9 = tpu.matmul %7, %8, %cst_12 {dimension_numbers = #tpu.dot_dimension_numbers<[1], [0], [0], [1], [0, 0, 1, 1], [], []>} : vector<8x32xf32>, vector<32x32xf32>, vector<8x32xf32> -> vector<8x32xf32>
    %10 = arith.addf %6, %9 : vector<8x32xf32>
    %c0_13 = arith.constant 0 : index
    %c0_14 = arith.constant 0 : index
    %11 = vector.load %arg1[%c0_13, %c0_14] : memref<8x32xf32, #tpu.memory_space<vmem>>, vector<8x32xf32>
    %12 = arith.mulf %10, %11 : vector<8x32xf32>
    %cst_15 = arith.constant dense<0.000000e+00> : vector<8xf32>
    %13 = vector.multi_reduction <add>, %12, %cst_15 [1] : vector<8x32xf32> to vector<8xf32>
    %14 = math.tanh %13 : vector<8xf32>
    %15 = vector.shape_cast %14 : vector<8xf32> to vector<1x8xf32>
    %c0_16 = arith.constant 0 : index
    %c0_17 = arith.constant 0 : index
    %16 = vector.load %arg8[%c0_16, %c0_17] : memref<1x8xf32, #tpu.memory_space<vmem>>, vector<1x8xf32>
    tpu.vector_store %arg8[%c0_16, %c0_17], %15 {strides = array<i32>} : memref<1x8xf32, #tpu.memory_space<vmem>>, vector<1x8xf32>,
    return
  }
  func.func @transform_0(%arg0: i32) -> (i32, i32) {
    %c0_i32 = arith.constant 0 : i32
    %c0_i32_0 = arith.constant 0 : i32
    return %arg0, %c0_i32 : i32, i32
  }
  func.func @transform_1(%arg0: i32) -> (i32, i32) {
    %c0_i32 = arith.constant 0 : i32
    %c0_i32_0 = arith.constant 0 : i32
    return %arg0, %c0_i32 : i32, i32
  }
  func.func @transform_2(%arg0: i32) -> (i32, i32) {
    %c0_i32 = arith.constant 0 : i32
    %c0_i32_0 = arith.constant 0 : i32
    return %arg0, %c0_i32 : i32, i32
  }
  func.func @transform_3(%arg0: i32) -> (i32, i32) {
    %c0_i32 = arith.constant 0 : i32
    %c0_i32_0 = arith.constant 0 : i32
    return %arg0, %c0_i32 : i32, i32
  }
  func.func @transform_4(%arg0: i32) -> (i32, i32) {
    %c0_i32 = arith.constant 0 : i32
    %c0_i32_0 = arith.constant 0 : i32
    %c0_i32_1 = arith.constant 0 : i32
    return %c0_i32, %c0_i32_0 : i32, i32
  }
  func.func @transform_5(%arg0: i32) -> (i32, i32) {
    %c0_i32 = arith.constant 0 : i32
    %c0_i32_0 = arith.constant 0 : i32
    %c0_i32_1 = arith.constant 0 : i32
    return %c0_i32, %c0_i32_0 : i32, i32
  }
  func.func @transform_6(%arg0: i32) -> (i32, i32) {
    %c0_i32 = arith.constant 0 : i32
    %c0_i32_0 = arith.constant 0 : i32
    %c0_i32_1 = arith.constant 0 : i32
    return %c0_i32, %c0_i32_0 : i32, i32
  }
  func.func @transform_7(%arg0: i32) -> (i32, i32) {
    %c0_i32 = arith.constant 0 : i32
    %c0_i32_0 = arith.constant 0 : i32
    return %c0_i32, %arg0 : i32, i32
  }
}

</mosaic_0001>

<llo_original>
// kernel: tpu_custom_call.1
$region0: #{tpu_custom_call.1}
  #allocation0 [shape = 'u32[]', space=smem, size = 0x4, offset = 0x4, fixed_abs, tag = 'smem constant byte address 0x4 - core index']
  #allocation1 [shape = 'u32[144,128]{1,0:T(1,128)}', space=vmem, size = 0x12000, scoped, tag = 'internal scratch']
  %s0 = inlined_call_operand.hbm [shape: f32[8,32], index: 0, kind: input, shape index: {}]
  %s1 = inlined_call_operand.hbm [shape: f32[8,32], index: 1, kind: input, shape index: {}]
  %s2 = inlined_call_operand.hbm [shape: f32[8,32], index: 2, kind: input, shape index: {}]
  %s3 = inlined_call_operand.vmem [shape: f32[8,32], index: 3, kind: input, shape index: {}]
  %s4 = inlined_call_operand.hbm [shape: f32[32,32], index: 4, kind: input, shape index: {}]
  %s5 = inlined_call_operand.hbm [shape: f32[32,32], index: 5, kind: input, shape index: {}]
  %s6 = inlined_call_operand.hbm [shape: f32[32,32], index: 6, kind: input, shape index: {}]
  %s7 = inlined_call_operand.hbm [shape: f32[1,8], index: 7, kind: output, shape index: {}]
  %s8 = sld [smem:[#allocation0]]
  $region62: #{tpu_custom_call.1} parent=0
    _
  %s10 = ssub.s32 1, %s8
  %s11 = scalar_select 0, %s10, %s8
  $region1: #{tpu_custom_call.1} parent=0
    #allocation2 [shape = 'u8[4096]{0}', space=vmem, size = 0x1000, scoped, tag = 'input window, operand 0, single buffered']
    #allocation3 [shape = 's32[1]{0}', space=sflag, size = 0x4, scoped, tag = 'scoped memory for tpu_custom_call.1']
    #allocation4 [shape = 's32[1]{0}', space=sflag, size = 0x4, scoped, tag = 'scoped memory for tpu_custom_call.1']
    #allocation5 [shape = 'u8[4096]{0}', space=vmem, size = 0x1000, scoped, tag = 'input window, operand 1, single buffered']
    #allocation6 [shape = 's32[1]{0}', space=sflag, size = 0x4, scoped, tag = 'scoped memory for tpu_custom_call.1']
    #allocation7 [shape = 'u8[4096]{0}', space=vmem, size = 0x1000, scoped, tag = 'input window, operand 2, single buffered']
    #allocation8 [shape = 'u8[16384]{0}', space=vmem, size = 0x4000, scoped, tag = 'input window, operand 4, single buffered']
    #allocation9 [shape = 's32[1]{0}', space=sflag, size = 0x4, scoped, tag = 'scoped memory for tpu_custom_call.1']
    #allocation10 [shape = 'u8[16384]{0}', space=vmem, size = 0x4000, scoped, tag = 'input window, operand 5, single buffered']
    #allocation11 [shape = 'u8[16384]{0}', space=vmem, size = 0x4000, scoped, tag = 'input window, operand 6, single buffered']
    #allocation12 [shape = 's32[1]{0}', space=sflag, size = 0x4, scoped, tag = 'scoped memory for tpu_custom_call.1']
    #allocation13 [shape = 'u8[512]{0}', space=vmem, size = 0x400, scoped, tag = 'output window, operand 0, single buffered']
    %12 = vsyncpa [#allocation3], 0
    %13 = vsyncpa [#allocation6], 0
    %14 = vsyncpa [#allocation9], 0
    %15 = vsyncpa [#allocation12], 0
    %16 = vsyncpa [#allocation4], 0
    // Predicated region
    $region2: #{tpu_custom_call.1} parent=1 // pred_check
      _
    $region3: #{tpu_custom_call.1} parent=1 // pred_check_branch
      %18 = sbr.rel (0) target = $region5
    $region4: #{tpu_custom_call.1} parent=1 // pred_region
      %s20 = ssub.s32 128, 128
      %21 = vsyncadd [#allocation3], %s20
      %s23 = sshll.u32 [#allocation2], 4
      %s24 = int_to_ptr.vmem [resolvable:$true] %s23
      %26 = dma.hbm_to_vmem [thread:$0]  %s0, 128, %s24, [#allocation3]
    $region5: #{tpu_custom_call.1} parent=1 // pred_fallthru
      _
    // Predicated region
    $region6: #{tpu_custom_call.1} parent=1 // pred_check
      _
    $region7: #{tpu_custom_call.1} parent=1 // pred_check_branch
      %28 = sbr.rel (0) target = $region9
    $region8: #{tpu_custom_call.1} parent=1 // pred_region
      %s30 = ssub.s32 128, 128
      %31 = vsyncadd [#allocation6], %s30
      %s33 = sshll.u32 [#allocation5], 4
      %s34 = int_to_ptr.vmem [resolvable:$true] %s33
      %36 = dma.hbm_to_vmem [thread:$0]  %s1, 128, %s34, [#allocation6]
    $region9: #{tpu_custom_call.1} parent=1 // pred_fallthru
      _
    // Predicated region
    $region10: #{tpu_custom_call.1} parent=1 // pred_check
      _
    $region11: #{tpu_custom_call.1} parent=1 // pred_check_branch
      %38 = sbr.rel (0) target = $region13
    $region12: #{tpu_custom_call.1} parent=1 // pred_region
      %s40 = ssub.s32 128, 128
      %41 = vsyncadd [#allocation6], %s40
      %s43 = sshll.u32 [#allocation7], 4
      %s44 = int_to_ptr.vmem [resolvable:$true] %s43
      %46 = dma.hbm_to_vmem [thread:$0]  %s2, 128, %s44, [#allocation6]
    $region13: #{tpu_custom_call.1} parent=1 // pred_fallthru
      _
    // Predicated region
    $region14: #{tpu_custom_call.1} parent=1 // pred_check
      _
    $region15: #{tpu_custom_call.1} parent=1 // pred_check_branch
      %48 = sbr.rel (0) target = $region17
    $region16: #{tpu_custom_call.1} parent=1 // pred_region
      _
    $region17: #{tpu_custom_call.1} parent=1 // pred_fallthru
      _
    // Predicated region
    $region18: #{tpu_custom_call.1} parent=1 // pred_check
      _
    $region19: #{tpu_custom_call.1} parent=1 // pred_check_branch
      %50 = sbr.rel (0) target = $region21
    $region20: #{tpu_custom_call.1} parent=1 // pred_region
      %s52 = ssub.s32 512, 512
      %53 = vsyncadd [#allocation9], %s52
      %s54 = sshll.u32 [#allocation8], 4
      %s55 = int_to_ptr.vmem [resolvable:$true] %s54
      %60 = dma.hbm_to_vmem [thread:$0]  %s4, 512, %s55, [#allocation9], 128, 128, 8
    $region21: #{tpu_custom_call.1} parent=1 // pred_fallthru
      _
    // Predicated region
    $region22: #{tpu_custom_call.1} parent=1 // pred_check
      _
    $region23: #{tpu_custom_call.1} parent=1 // pred_check_branch
      %62 = sbr.rel (0) target = $region25
    $region24: #{tpu_custom_call.1} parent=1 // pred_region
      %s64 = ssub.s32 512, 512
      %65 = vsyncadd [#allocation9], %s64
      %s66 = sshll.u32 [#allocation10], 4
      %s67 = int_to_ptr.vmem [resolvable:$true] %s66
      %72 = dma.hbm_to_vmem [thread:$0]  %s5, 512, %s67, [#allocation9], 128, 128, 8
    $region25: #{tpu_custom_call.1} parent=1 // pred_fallthru
      _
    // Predicated region
    $region26: #{tpu_custom_call.1} parent=1 // pred_check
      _
    $region27: #{tpu_custom_call.1} parent=1 // pred_check_branch
      %74 = sbr.rel (0) target = $region29
    $region28: #{tpu_custom_call.1} parent=1 // pred_region
      %s76 = ssub.s32 512, 512
      %77 = vsyncadd [#allocation12], %s76
      %s78 = sshll.u32 [#allocation11], 4
      %s79 = int_to_ptr.vmem [resolvable:$true] %s78
      %84 = dma.hbm_to_vmem [thread:$0]  %s6, 512, %s79, [#allocation12], 128, 128, 8
    $region29: #{tpu_custom_call.1} parent=1 // pred_fallthru
      _
    // Predicated region
    $region30: #{tpu_custom_call.1} parent=1 // pred_check
      _
    $region31: #{tpu_custom_call.1} parent=1 // pred_check_branch
      %86 = sbr.rel (0) target = $region33
    $region32: #{tpu_custom_call.1} parent=1 // pred_region
      %87 = dma.done [#allocation3], 128
    $region33: #{tpu_custom_call.1} parent=1 // pred_fallthru
      _
    // Predicated region
    $region34: #{tpu_custom_call.1} parent=1 // pred_check
      _
    $region35: #{tpu_custom_call.1} parent=1 // pred_check_branch
      %89 = sbr.rel (0) target = $region37
    $region36: #{tpu_custom_call.1} parent=1 // pred_region
      %90 = dma.done [#allocation6], 128
    $region37: #{tpu_custom_call.1} parent=1 // pred_fallthru
      _
    // Predicated region
    $region38: #{tpu_custom_call.1} parent=1 // pred_check
      _
    $region39: #{tpu_custom_call.1} parent=1 // pred_check_branch
      %92 = sbr.rel (0) target = $region41
    $region40: #{tpu_custom_call.1} parent=1 // pred_region
      %93 = dma.done [#allocation6], 128
    $region41: #{tpu_custom_call.1} parent=1 // pred_fallthru
      _
    // Predicated region
    $region42: #{tpu_custom_call.1} parent=1 // pred_check
      _
    $region43: #{tpu_custom_call.1} parent=1 // pred_check_branch
      %95 = sbr.rel (0) target = $region45
    $region44: #{tpu_custom_call.1} parent=1 // pred_region
      %96 = dma.done [#allocation9], 512
    $region45: #{tpu_custom_call.1} parent=1 // pred_fallthru
      _
    // Predicated region
    $region46: #{tpu_custom_call.1} parent=1 // pred_check
      _
    $region47: #{tpu_custom_call.1} parent=1 // pred_check_branch
      %98 = sbr.rel (0) target = $region49
    $region48: #{tpu_custom_call.1} parent=1 // pred_region
      %99 = dma.done [#allocation9], 512
    $region49: #{tpu_custom_call.1} parent=1 // pred_fallthru
      _
    // Predicated region
    $region50: #{tpu_custom_call.1} parent=1 // pred_check
      _
    $region51: #{tpu_custom_call.1} parent=1 // pred_check_branch
      %101 = sbr.rel (0) target = $region53
    $region52: #{tpu_custom_call.1} parent=1 // pred_region
      %102 = dma.done [#allocation12], 512
    $region53: #{tpu_custom_call.1} parent=1 // pred_fallthru
      _
    %v103 = vld [vmem:[#allocation5] sm:$0xff]
    %v104 = vld [vmem:[#allocation8] sm:$0xff]
    %v105 = vld [vmem:[#allocation8 + $0x8] sm:$0xff]
    %v106 = vld [vmem:[#allocation8 + $0x10] sm:$0xff]
    %v107 = vld [vmem:[#allocation8 + $0x18] sm:$0xff]
    %v108 = vld [vmem:[#allocation7] sm:$0xff]
    %v109 = vld [vmem:[#allocation10] sm:$0xff]
    %v110 = vld [vmem:[#allocation10 + $0x8] sm:$0xff]
    %v111 = vld [vmem:[#allocation10 + $0x10] sm:$0xff]
    %v112 = vld [vmem:[#allocation10 + $0x18] sm:$0xff]
    %vm113 = vcmask 261120
    %v115 = vsel %vm113, %v108, 0
    %117 = vmatprep.subr.mxu0 0.0
    %118 = vmatpush1.msra.mxu0 %v109
    %119 = vmatprep.subr.mxu0 0.0
    %120 = vmatpush1.msra.mxu0 %v110
    %121 = vmatprep.subr.mxu0 0.0
    %122 = vmatpush1.msra.mxu0 %v111
    %123 = vmatprep.subr.mxu0 0.0
    %124 = vmatpush1.msra.mxu0 %v112
    %125 = vmatprep.subr.mxu0 0.0
    %126 = vmatpush1.msra.mxu0 0.0
    %127 = vmatprep.subr.mxu0 0.0
    %128 = vmatpush1.msra.mxu0 0.0
    %129 = vmatprep.subr.mxu0 0.0
    %130 = vmatpush1.msra.mxu0 0.0
    %131 = vmatprep.subr.mxu0 0.0
    %132 = vmatpush1.msra.mxu0 0.0
    %133 = vmatprep.subr.mxu0 0.0
    %134 = vmatpush1.msra.mxu0 0.0
    %135 = vmatprep.subr.mxu0 0.0
    %136 = vmatpush1.msra.mxu0 0.0
    %137 = vmatprep.subr.mxu0 0.0
    %138 = vmatpush1.msra.mxu0 0.0
    %139 = vmatprep.subr.mxu0 0.0
    %140 = vmatpush1.msra.mxu0 0.0
    %141 = vmatprep.subr.mxu0 0.0
    %142 = vmatpush1.msra.mxu0 0.0
    %143 = vmatprep.subr.mxu0 0.0
    %144 = vmatpush1.msra.mxu0 0.0
    %145 = vmatprep.subr.mxu0 0.0
    %146 = vmatpush1.msra.mxu0 0.0
    %147 = vmatprep.subr.mxu0 0.0
    %148 = vmatpush1.msra.mxu0 0.0
    %149 = vmatprep.subr.mxu0 0.0
    %150 = vmatpush1.msra.mxu0 0.0
    %151 = vmatprep.subr.mxu0 0.0
    %152 = vmatpush1.msra.mxu0 0.0
    %153 = vmatprep.subr.mxu0 0.0
    %154 = vmatpush1.msra.mxu0 0.0
    %155 = vmatprep.subr.mxu0 0.0
    %156 = vmatpush1.msra.mxu0 0.0
    %157 = vmatprep.subr.mxu0 0.0
    %158 = vmatpush1.msra.mxu0 0.0
    %159 = vmatprep.subr.mxu0 0.0
    %160 = vmatpush1.msra.mxu0 0.0
    %161 = vmatprep.subr.mxu0 0.0
    %162 = vmatpush1.msra.mxu0 0.0
    %163 = vmatprep.subr.mxu0 0.0
    %164 = vmatpush1.msra.mxu0 0.0
    %165 = vmatprep.subr.mxu0 0.0
    %166 = vmatpush1.msra.mxu0 0.0
    %167 = vmatprep.subr.mxu0 0.0
    %168 = vmatpush1.msra.mxu0 0.0
    %169 = vmatprep.subr.mxu0 0.0
    %170 = vmatpush1.msra.mxu0 0.0
    %171 = vmatprep.subr.mxu0 0.0
    %172 = vmatpush1.msra.mxu0 0.0
    %173 = vmatprep.subr.mxu0 0.0
    %174 = vmatpush1.msra.mxu0 0.0
    %175 = vmatprep.subr.mxu0 0.0
    %176 = vmatpush1.msra.mxu0 0.0
    %177 = vmatprep.subr.mxu0 0.0
    %178 = vmatpush1.msra.mxu0 0.0
    %179 = vmatprep.subr.mxu0 0.0
    %180 = vmatpush1.msra.mxu0 0.0
    %181 = vmatprep.mubr.f32.mxu0 0.0
    %182 = vmatmul.mubr.f32.gmra.mrb[0].mxu0 %v115
    %v183 = vpop.f32.mrb[0].mxu0
    %v184 = vadd.f32 0.0, %v183
    %v185 = vpop.f32.mrb[0].mxu0
    %186 = vdwg.mxu0
    %v188 = vsel %vm113, %v103, 0
    %190 = vmatprep.subr.mxu0 0.0
    %191 = vmatpush1.msra.mxu0 %v104
    %192 = vmatprep.subr.mxu0 0.0
    %193 = vmatpush1.msra.mxu0 %v105
    %194 = vmatprep.subr.mxu0 0.0
    %195 = vmatpush1.msra.mxu0 %v106
    %196 = vmatprep.subr.mxu0 0.0
    %197 = vmatpush1.msra.mxu0 %v107
    %198 = vmatprep.subr.mxu0 0.0
    %199 = vmatpush1.msra.mxu0 0.0
    %200 = vmatprep.subr.mxu0 0.0
    %201 = vmatpush1.msra.mxu0 0.0
    %202 = vmatprep.subr.mxu0 0.0
    %203 = vmatpush1.msra.mxu0 0.0
    %204 = vmatprep.subr.mxu0 0.0
    %205 = vmatpush1.msra.mxu0 0.0
    %206 = vmatprep.subr.mxu0 0.0
    %207 = vmatpush1.msra.mxu0 0.0
    %208 = vmatprep.subr.mxu0 0.0
    %209 = vmatpush1.msra.mxu0 0.0
    %210 = vmatprep.subr.mxu0 0.0
    %211 = vmatpush1.msra.mxu0 0.0
    %212 = vmatprep.subr.mxu0 0.0
    %213 = vmatpush1.msra.mxu0 0.0
    %214 = vmatprep.subr.mxu0 0.0
    %215 = vmatpush1.msra.mxu0 0.0
    %216 = vmatprep.subr.mxu0 0.0
    %217 = vmatpush1.msra.mxu0 0.0
    %218 = vmatprep.subr.mxu0 0.0
    %219 = vmatpush1.msra.mxu0 0.0
    %220 = vmatprep.subr.mxu0 0.0
    %221 = vmatpush1.msra.mxu0 0.0
    %222 = vmatprep.subr.mxu0 0.0
    %223 = vmatpush1.msra.mxu0 0.0
    %224 = vmatprep.subr.mxu0 0.0
    %225 = vmatpush1.msra.mxu0 0.0
    %226 = vmatprep.subr.mxu0 0.0
    %227 = vmatpush1.msra.mxu0 0.0
    %228 = vmatprep.subr.mxu0 0.0
    %229 = vmatpush1.msra.mxu0 0.0
    %230 = vmatprep.subr.mxu0 0.0
    %231 = vmatpush1.msra.mxu0 0.0
    %232 = vmatprep.subr.mxu0 0.0
    %233 = vmatpush1.msra.mxu0 0.0
    %234 = vmatprep.subr.mxu0 0.0
    %235 = vmatpush1.msra.mxu0 0.0
    %236 = vmatprep.subr.mxu0 0.0
    %237 = vmatpush1.msra.mxu0 0.0
    %238 = vmatprep.subr.mxu0 0.0
    %239 = vmatpush1.msra.mxu0 0.0
    %240 = vmatprep.subr.mxu0 0.0
    %241 = vmatpush1.msra.mxu0 0.0
    %242 = vmatprep.subr.mxu0 0.0
    %243 = vmatpush1.msra.mxu0 0.0
    %244 = vmatprep.subr.mxu0 0.0
    %245 = vmatpush1.msra.mxu0 0.0
    %246 = vmatprep.subr.mxu0 0.0
    %247 = vmatpush1.msra.mxu0 0.0
    %248 = vmatprep.subr.mxu0 0.0
    %249 = vmatpush1.msra.mxu0 0.0
    %250 = vmatprep.subr.mxu0 0.0
    %251 = vmatpush1.msra.mxu0 0.0
    %252 = vmatprep.subr.mxu0 0.0
    %253 = vmatpush1.msra.mxu0 0.0
    %254 = vmatprep.mubr.f32.mxu0 0.0
    %255 = vmatmul.mubr.f32.gmra.mrb[0].mxu0 %v188
    %v256 = vpop.f32.mrb[0].mxu0
    %v257 = vadd.f32 %v184, %v256
    %v258 = vpop.f32.mrb[0].mxu0
    %259 = vdwg.mxu0
    %v260 = vld [vmem:[%s3] sm:$0xff]
    %v261 = vld [vmem:[#allocation11] sm:$0xff]
    %v262 = vld [vmem:[#allocation11 + $0x8] sm:$0xff]
    %v263 = vld [vmem:[#allocation11 + $0x10] sm:$0xff]
    %v264 = vld [vmem:[#allocation11 + $0x18] sm:$0xff]
    %v266 = vsel %vm113, %v260, 0
    %268 = vmatprep.subr.mxu0 0.0
    %269 = vmatpush1.msra.mxu0 %v261
    %270 = vmatprep.subr.mxu0 0.0
    %271 = vmatpush1.msra.mxu0 %v262
    %272 = vmatprep.subr.mxu0 0.0
    %273 = vmatpush1.msra.mxu0 %v263
    %274 = vmatprep.subr.mxu0 0.0
    %275 = vmatpush1.msra.mxu0 %v264
    %276 = vmatprep.subr.mxu0 0.0
    %277 = vmatpush1.msra.mxu0 0.0
    %278 = vmatprep.subr.mxu0 0.0
    %279 = vmatpush1.msra.mxu0 0.0
    %280 = vmatprep.subr.mxu0 0.0
    %281 = vmatpush1.msra.mxu0 0.0
    %282 = vmatprep.subr.mxu0 0.0
    %283 = vmatpush1.msra.mxu0 0.0
    %284 = vmatprep.subr.mxu0 0.0
    %285 = vmatpush1.msra.mxu0 0.0
    %286 = vmatprep.subr.mxu0 0.0
    %287 = vmatpush1.msra.mxu0 0.0
    %288 = vmatprep.subr.mxu0 0.0
    %289 = vmatpush1.msra.mxu0 0.0
    %290 = vmatprep.subr.mxu0 0.0
    %291 = vmatpush1.msra.mxu0 0.0
    %292 = vmatprep.subr.mxu0 0.0
    %293 = vmatpush1.msra.mxu0 0.0
    %294 = vmatprep.subr.mxu0 0.0
    %295 = vmatpush1.msra.mxu0 0.0
    %296 = vmatprep.subr.mxu0 0.0
    %297 = vmatpush1.msra.mxu0 0.0
    %298 = vmatprep.subr.mxu0 0.0
    %299 = vmatpush1.msra.mxu0 0.0
    %300 = vmatprep.subr.mxu0 0.0
    %301 = vmatpush1.msra.mxu0 0.0
    %302 = vmatprep.subr.mxu0 0.0
    %303 = vmatpush1.msra.mxu0 0.0
    %304 = vmatprep.subr.mxu0 0.0
    %305 = vmatpush1.msra.mxu0 0.0
    %306 = vmatprep.subr.mxu0 0.0
    %307 = vmatpush1.msra.mxu0 0.0
    %308 = vmatprep.subr.mxu0 0.0
    %309 = vmatpush1.msra.mxu0 0.0
    %310 = vmatprep.subr.mxu0 0.0
    %311 = vmatpush1.msra.mxu0 0.0
    %312 = vmatprep.subr.mxu0 0.0
    %313 = vmatpush1.msra.mxu0 0.0
    %314 = vmatprep.subr.mxu0 0.0
    %315 = vmatpush1.msra.mxu0 0.0
    %316 = vmatprep.subr.mxu0 0.0
    %317 = vmatpush1.msra.mxu0 0.0
    %318 = vmatprep.subr.mxu0 0.0
    %319 = vmatpush1.msra.mxu0 0.0
    %320 = vmatprep.subr.mxu0 0.0
    %321 = vmatpush1.msra.mxu0 0.0
    %322 = vmatprep.subr.mxu0 0.0
    %323 = vmatpush1.msra.mxu0 0.0
    %324 = vmatprep.subr.mxu0 0.0
    %325 = vmatpush1.msra.mxu0 0.0
    %326 = vmatprep.subr.mxu0 0.0
    %327 = vmatpush1.msra.mxu0 0.0
    %328 = vmatprep.subr.mxu0 0.0
    %329 = vmatpush1.msra.mxu0 0.0
    %330 = vmatprep.subr.mxu0 0.0
    %331 = vmatpush1.msra.mxu0 0.0
    %332 = vmatprep.mubr.f32.mxu0 0.0
    %333 = vmatmul.mubr.f32.gmra.mrb[0].mxu0 %v266
    %v334 = vpop.f32.mrb[0].mxu0
    %v335 = vadd.f32 0.0, %v334
    %v336 = vpop.f32.mrb[0].mxu0
    %337 = vdwg.mxu0
    %v338 = vadd.f32 %v257, %v335
    %v339 = vld [vmem:[#allocation2] sm:$0xff]
    %v340 = vmul.f32 %v338, %v339
    %v341 = vsel %vm113, %v340, 0.0
    %342 = vadd.xlane.f32.xlu0 %v341
    %v343 = vpop.xlane.xlu0 %342
    %v344 = vtanh.pop %v343
    %v346 = vlaneseq
    %v347 = vand.u32 %v346, 127
    %v348 = vlaneseq
    %v349 = vshrl.u32 %v348, 7
    %v350 = vsub.s32 %v347, %v349
    %v351 = vrot.slane %v344, %v350
    %vm353 = vcmask 57344
    %354 = vst.msk [vmem:[#allocation13] sm:$0x1] %vm353, %v351
    // Predicated region
    $region54: #{tpu_custom_call.1} parent=1 // pred_check
      _
    $region55: #{tpu_custom_call.1} parent=1 // pred_check_branch
      %356 = sbr.rel (0) target = $region57
    $region56: #{tpu_custom_call.1} parent=1 // pred_region
      %s358 = ssub.s32 16, 16
      %359 = vsyncadd [#allocation4], %s358
      %s361 = sshll.u32 [#allocation13], 4
      %s362 = int_to_ptr.vmem [resolvable:$true] %s361
      %364 = dma.vmem_to_hbm [thread:$0]  %s362, 16, %s7, [#allocation4]
    $region57: #{tpu_custom_call.1} parent=1 // pred_fallthru
      _
    // Predicated region
    $region58: #{tpu_custom_call.1} parent=1 // pred_check
      _
    $region59: #{tpu_custom_call.1} parent=1 // pred_check_branch
      %366 = sbr.rel (0) target = $region61
    $region60: #{tpu_custom_call.1} parent=1 // pred_region
      %367 = dma.done [#allocation4], 16
    $region61: #{tpu_custom_call.1} parent=1 // pred_fallthru
      _
    %368 = vsyncpa [#allocation3], 1
    %369 = vsyncpa [#allocation6], 1
    %370 = vsyncpa [#allocation9], 1
    %371 = vsyncpa [#allocation12], 1
    %372 = vsyncpa [#allocation4], 1

</llo_original>
